<compile_context>
chip_gen: v5e
topology: v5e:2x2
jax: 0.10.0
libtpu: 0.0.40
codegen_flags: <defaults>
</compile_context>

<pallas_src>
import functools

import jax
import jax.numpy as jnp
from jax import lax
from jax.experimental import pallas as pl
from jax.experimental.pallas import tpu as pltpu


def _round_up(x, m):
    return ((x + m - 1) // m) * m


def _cdiv(a, b):
    return -(-a // b)


def _make_kernel(kernel_size, stride, padding, t_out, cseg, cout, approx_sigmoid):
    """Builds the Pallas kernel body with static conv geometry baked in."""

    def kernel(x_ref, w_ref, b_ref, o_ref):
        # x_ref: (tile_b, T, tile_n, Cin)      matmul dtype (bf16 or f32)
        # w_ref: (K*Cin, 3*cseg)               matmul dtype, 128-aligned segments
        # b_ref: (1, 3*cseg)                   f32
        # o_ref: (tile_b, t_out, tile_n, cout) output dtype (true Cout, no padding)
        tile_b, _, tile_n, cin = x_ref.shape
        rows = tile_b * t_out * tile_n

        x = x_ref[...]
        if padding > 0:
            # Conv zero-padding along time, done in VMEM (major-dim concat) so
            # the wrapper never writes a padded copy of X back to HBM.
            zpad = jnp.zeros((tile_b, padding, tile_n, cin), dtype=x.dtype)
            x = jnp.concatenate([zpad, x, zpad], axis=1)

        # Fold the K temporal taps into a single contraction: LHS (rows, K*Cin).
        span = stride * (t_out - 1) + 1
        pieces = []
        for k in range(kernel_size):                      # K small & static
            xk = lax.slice_in_dim(x, k, k + span, stride, axis=1)
            pieces.append(xk.reshape(rows, cin))          # major-dim merge: free
        lhs = pieces[0] if kernel_size == 1 else jnp.concatenate(pieces, axis=-1)

        # One MXU matmul for all three convolutions; f32 accumulate.
        y = jnp.dot(lhs, w_ref[...], preferred_element_type=jnp.float32)
        y = y + b_ref[...]

        # Lane-tile aligned P / Q / R segments (cseg is a multiple of 128).
        p = y[:, :cseg]
        q = y[:, cseg:2 * cseg]
        r = y[:, 2 * cseg:]
        if approx_sigmoid:
            sig = pl.reciprocal(1.0 + jnp.exp(-q), approx=True)   # EUP exp + recip
        else:
            sig = 1.0 / (1.0 + jnp.exp(-q))                       # exact (f32 path)
        h = jnp.maximum(p * sig + r, 0.0)                         # f32 VPU epilogue

        # Store only the true Cout channels -> no HBM write amplification.
        o_ref[...] = h[:, :cout].reshape(tile_b, t_out, tile_n, cout).astype(o_ref.dtype)

    return kernel


def _pick_tiles(B, N, T, T_out, Cin, Cout, K, Cseg, padding, bpe_in, bpe_out, cap):
    """Choose (tile_b, tile_n, n_tiles, N_pad, est_bytes) to fill the VMEM budget."""
    n8 = _round_up(N, 8)

    def est(tile_b, tile_n):
        rows = tile_b * T_out * tile_n
        in_blk = tile_b * T * tile_n * Cin * bpe_in
        pad_cp = tile_b * (T + 2 * padding) * tile_n * Cin * bpe_in if padding else 0
        out_blk = tile_b * T_out * tile_n * Cout * bpe_out
        w_b = K * Cin * 3 * Cseg * bpe_in
        lhs_b = rows * K * Cin * bpe_in
        acc_b = rows * 3 * Cseg * 4
        tmp_b = 2 * rows * Cseg * 4
        return int(1.15 * (2 * in_blk + pad_cp + 2 * out_blk + 2 * w_b
                           + lhs_b + acc_b + tmp_b))

    # Largest N tile (fewest N tiles) that fits the budget with tile_b = 1.
    nt = 1
    while True:
        tile_n = _round_up(_cdiv(n8, nt), 8)
        if est(1, tile_n) <= cap or tile_n <= 8:
            break
        nt += 1
    n_tiles = _cdiv(n8, tile_n)

    # Fold batch elements while the estimate still fits (tile_b must divide B).
    tile_b = 1
    for cand in range(B, 0, -1):
        if B % cand == 0 and est(cand, tile_n) <= cap:
            tile_b = cand
            break

    # Keep at least 2 grid steps so both v7x TensorCores get work.
    if (B // tile_b) * n_tiles < 2:
        if tile_b > 1:
            for cand in range(tile_b - 1, 0, -1):
                if B % cand == 0:
                    tile_b = cand
                    break
        elif n8 >= 16:
            tile_n = _round_up(_cdiv(n8, 2), 8)
            n_tiles = _cdiv(n8, tile_n)

    return tile_b, tile_n, n_tiles, tile_n * n_tiles, est(tile_b, tile_n)


def temporal_conv_pallas(X, params, kernel_size, stride, padding,
                         matmul_dtype=jnp.bfloat16, approx_sigmoid=None):
    """X: (B, T, N, Cin) -> (B, T_out, N, Cout), matching the PyTorch module."""
    B, T, N, Cin = X.shape
    Cout = params["w1"].shape[0]
    K = kernel_size
    T_out = (T + 2 * padding - K) // stride + 1
    assert T_out >= 1, "invalid conv geometry"
    if approx_sigmoid is None:
        approx_sigmoid = jnp.dtype(matmul_dtype) != jnp.dtype(jnp.float32)

    # ---- fused, lane-aligned weight / bias: (conv1 | conv2 | conv3) ---------
    # Row index k*Cin + ci matches the lane-concat order of the kernel's LHS.
    Cseg = _round_up(max(Cout, 1), 128)          # segment padding: kernel-internal only
    w_all = jnp.zeros((K * Cin, 3 * Cseg), jnp.float32)
    b_all = jnp.zeros((1, 3 * Cseg), jnp.float32)
    for s, name in enumerate(("1", "2", "3")):
        w = params[f"w{name}"].reshape(Cout, Cin, K)               # (Cout, Cin, K)
        w = jnp.transpose(w, (2, 1, 0)).reshape(K * Cin, Cout)     # (K*Cin, Cout)
        w_all = w_all.at[:, s * Cseg:s * Cseg + Cout].set(w)
        b_all = b_all.at[0, s * Cseg:s * Cseg + Cout].set(params[f"b{name}"])
    w_all = w_all.astype(matmul_dtype)

    # ---- per-chip VMEM budget (~75% of physical: ~48 MiB v7x, ~96 MiB v5e/v6e)
    try:
        vmem_cap = int(pltpu.get_tpu_info().vmem_capacity_bytes)
    except Exception:
        vmem_cap = 64 * 1024 * 1024
    cap = (3 * vmem_cap) // 4

    bpe_in = jnp.dtype(matmul_dtype).itemsize
    bpe_out = jnp.dtype(X.dtype).itemsize
    tile_b, tile_n, n_tiles, N_pad, est = _pick_tiles(
        B, N, T, T_out, Cin, Cout, K, Cseg, padding, bpe_in, bpe_out, cap)

    # ---- the only wrapper-side pass over X: optional N sublane-pad + cast ---
    # (fuse under jit; disappears entirely if X is already bf16 and N is tiled).
    Xw = X
    if N_pad != N:
        Xw = jnp.pad(Xw, ((0, 0), (0, 0), (0, N_pad - N), (0, 0)))
    Xw = Xw.astype(matmul_dtype)

    grid = (B // tile_b, n_tiles)
    kernel = _make_kernel(K, stride, padding, T_out, Cseg, Cout, approx_sigmoid)
    vmem_limit = int(min(int(0.9 * vmem_cap), max(cap, 2 * est)))

    out = pl.pallas_call(
        kernel,
        out_shape=jax.ShapeDtypeStruct((B, T_out, N_pad, Cout), X.dtype),
        grid_spec=pltpu.PrefetchScalarGridSpec(
            num_scalar_prefetch=0,
            grid=grid,
            in_specs=[
                pl.BlockSpec((tile_b, T, tile_n, Cin), lambda b, j: (b, 0, j, 0)),
                pl.BlockSpec((K * Cin, 3 * Cseg), lambda b, j: (0, 0)),
                pl.BlockSpec((1, 3 * Cseg), lambda b, j: (0, 0)),
            ],
            out_specs=pl.BlockSpec((tile_b, T_out, tile_n, Cout),
                                   lambda b, j: (b, 0, j, 0)),
        ),
        compiler_params=pltpu.CompilerParams(
            dimension_semantics=("parallel", "parallel"),
            vmem_limit_bytes=vmem_limit),
    )(Xw, w_all, b_all)

    # Only exists when N needed sublane padding; channels are never padded.
    if N_pad != N:
        out = out[:, :, :N, :]
    return out                                   # (B, T_out, N, Cout)


def temporal_conv_reference(X, params, kernel_size, stride, padding):
    """Pure-JAX reference mirroring the PyTorch forward (for validation)."""
    Xp = jnp.transpose(X, (0, 3, 2, 1))                       # NCHW: (B, Cin, N, T)

    def conv(w, b):
        y = lax.conv_general_dilated(
            Xp, w, window_strides=(1, stride),
            padding=((0, 0), (padding, padding)),
            dimension_numbers=("NCHW", "OIHW", "NCHW"))
        return y + b[None, :, None, None]

    P = conv(params["w1"], params["b1"])
    Q = jax.nn.sigmoid(conv(params["w2"], params["b2"]))
    H = jnp.maximum(P * Q + conv(params["w3"], params["b3"]), 0.0)
    return jnp.transpose(H, (0, 3, 2, 1))                     # (B, T_out, N, Cout)


def init_params(key, in_channels, out_channels, kernel_size):
    """Deterministic init matching Conv2d parameter shapes."""
    fan_in = in_channels * 1 * kernel_size
    bound = 1.0 / (fan_in ** 0.5)
    keys = jax.random.split(key, 6)
    shape_w = (out_channels, in_channels, 1, kernel_size)
    params = {}
    for i, name in enumerate(("1", "2", "3")):
        params[f"w{name}"] = jax.random.uniform(
            keys[2 * i], shape_w, jnp.float32, -bound, bound)
        params[f"b{name}"] = jax.random.uniform(
            keys[2 * i + 1], (out_channels,), jnp.float32, -bound, bound)
    return params


if __name__ == "__main__":
    # Small, module-consistent shapes: (batch, time, nodes, in_channels)
    B, T, N, Cin = 2, 16, 8, 4
    Cout, K, stride, padding = 8, 3, 1, 1

    key = jax.random.PRNGKey(0)
    kx, kp = jax.random.split(key)
    X = jax.random.normal(kx, (B, T, N, Cin), dtype=jnp.float32)
    params = init_params(kp, Cin, Cout, K)

    run_bf16 = jax.jit(functools.partial(
        temporal_conv_pallas, kernel_size=K, stride=stride, padding=padding,
        matmul_dtype=jnp.bfloat16))
    run_f32 = jax.jit(functools.partial(
        temporal_conv_pallas, kernel_size=K, stride=stride, padding=padding,
        matmul_dtype=jnp.float32))

    # Primary (recommended) path: bf16 MXU operands, f32 accumulate/epilogue.
    out_bf16 = jax.block_until_ready(run_bf16(X, params))
    # f32 matmul path with an exact sigmoid for the correctness check.
    out_f32 = jax.block_until_ready(run_f32(X, params))

    ref = temporal_conv_reference(X, params, K, stride, padding)
    assert out_f32.shape == ref.shape, (out_f32.shape, ref.shape)
    assert jnp.allclose(out_f32, ref, atol=5e-3, rtol=5e-3), "f32 path mismatch"

    # bf16 path vs a reference whose inputs/weights got the same bf16 rounding.
    Xq = X.astype(jnp.bfloat16).astype(jnp.float32)
    pq = {k: (v.astype(jnp.bfloat16).astype(jnp.float32) if k.startswith("w") else v)
          for k, v in params.items()}
    ref_q = temporal_conv_reference(Xq, pq, K, stride, padding)
    assert out_bf16.shape == ref.shape, (out_bf16.shape, ref.shape)
    assert jnp.allclose(out_bf16, ref_q, atol=2e-2, rtol=2e-2), "bf16 path mismatch"

    print("KERNEL_OK")
</pallas_src>

<mosaic_0001>
module attributes {stable_mosaic.version = 11 : i64} {
  func.func @kernel(%arg0: i32, %arg1: i32, %arg2: memref<1x16x8x4xbf16, #tpu.memory_space<vmem>>, %arg3: memref<12x384xbf16, #tpu.memory_space<vmem>>, %arg4: memref<1x384xf32, #tpu.memory_space<vmem>>, %arg5: memref<1x16x8x8xf32, #tpu.memory_space<vmem>>) attributes {dimension_semantics = [#tpu.dimension_semantics<parallel>, #tpu.dimension_semantics<parallel>], iteration_bounds = array<i64: 2, 1>, scalar_prefetch = 0 : i64, scratch_operands = 0 : i64, tpu.core_type = #tpu.core_type<tc>, window_params = [{transform_indices = @transform_0, window_bounds = array<i64: 1, 16, 8, 4>}, {pipeline_mode = #tpu.pipeline_mode<synchronous>, transform_indices = @transform_1, window_bounds = array<i64: 12, 384>}, {pipeline_mode = #tpu.pipeline_mode<synchronous>, transform_indices = @transform_2, window_bounds = array<i64: 1, 384>}, {transform_indices = @transform_3, window_bounds = array<i64: 1, 16, 8, 8>}]} {
    %c0 = arith.constant 0 : index
    %c0_0 = arith.constant 0 : index
    %c0_1 = arith.constant 0 : index
    %c0_2 = arith.constant 0 : index
    %0 = vector.load %arg2[%c0, %c0_0, %c0_1, %c0_2] : memref<1x16x8x4xbf16, #tpu.memory_space<vmem>>, vector<1x16x8x4xbf16>
    %cst = arith.constant 0.000000e+00 : bf16
    %1 = vector.broadcast %cst : bf16 to vector<1x1x8x4xbf16>
    %2 = tpu.concatenate %1, %0, %1 in 1 : vector<1x1x8x4xbf16>, vector<1x16x8x4xbf16>, vector<1x1x8x4xbf16> -> vector<1x18x8x4xbf16>
    %3 = vector.extract_strided_slice %2 {offsets = [0, 0, 0, 0], sizes = [1, 16, 8, 4], strides = [1, 1, 1, 1]} : vector<1x18x8x4xbf16> to vector<1x16x8x4xbf16>
    %4 = vector.shape_cast %3 : vector<1x16x8x4xbf16> to vector<128x4xbf16>
    %5 = vector.extract_strided_slice %2 {offsets = [0, 1, 0, 0], sizes = [1, 16, 8, 4], strides = [1, 1, 1, 1]} : vector<1x18x8x4xbf16> to vector<1x16x8x4xbf16>
    %6 = vector.shape_cast %5 : vector<1x16x8x4xbf16> to vector<128x4xbf16>
    %7 = vector.extract_strided_slice %2 {offsets = [0, 2, 0, 0], sizes = [1, 16, 8, 4], strides = [1, 1, 1, 1]} : vector<1x18x8x4xbf16> to vector<1x16x8x4xbf16>
    %8 = vector.shape_cast %7 : vector<1x16x8x4xbf16> to vector<128x4xbf16>
    %9 = tpu.concatenate %4, %6, %8 in 1 : vector<128x4xbf16>, vector<128x4xbf16>, vector<128x4xbf16> -> vector<128x12xbf16>
    %c0_3 = arith.constant 0 : index
    %c0_4 = arith.constant 0 : index
    %10 = vector.load %arg3[%c0_3, %c0_4] : memref<12x384xbf16, #tpu.memory_space<vmem>>, vector<12x384xbf16>
    %cst_5 = arith.constant dense<0.000000e+00> : vector<128x384xf32>
    %11 = tpu.matmul %9, %10, %cst_5 {dimension_numbers = #tpu.dot_dimension_numbers<[1], [0], [0], [1], [0, 0, 1, 1], [], []>} : vector<128x12xbf16>, vector<12x384xbf16>, vector<128x384xf32> -> vector<128x384xf32>
    %c0_6 = arith.constant 0 : index
    %c0_7 = arith.constant 0 : index
    %12 = vector.load %arg4[%c0_6, %c0_7] : memref<1x384xf32, #tpu.memory_space<vmem>>, vector<1x384xf32>
    %13 = vector.broadcast %12 : vector<1x384xf32> to vector<128x384xf32>
    %14 = arith.addf %11, %13 : vector<128x384xf32>
    %15 = vector.extract_strided_slice %14 {offsets = [0, 0], sizes = [128, 128], strides = [1, 1]} : vector<128x384xf32> to vector<128x128xf32>
    %16 = vector.extract_strided_slice %14 {offsets = [0, 128], sizes = [128, 128], strides = [1, 1]} : vector<128x384xf32> to vector<128x128xf32>
    %17 = vector.extract_strided_slice %14 {offsets = [0, 256], sizes = [128, 128], strides = [1, 1]} : vector<128x384xf32> to vector<128x128xf32>
    %cst_8 = arith.constant 0.000000e+00 : f32
    %18 = vector.broadcast %cst_8 : f32 to vector<128x128xf32>
    %19 = arith.subf %18, %16 : vector<128x128xf32>
    %20 = math.exp %19 : vector<128x128xf32>
    %cst_9 = arith.constant 1.000000e+00 : f32
    %21 = vector.broadcast %cst_9 : f32 to vector<128x128xf32>
    %22 = arith.addf %21, %20 : vector<128x128xf32>
    %23 = tpu.reciprocal %22 {approx = true} : vector<128x128xf32> -> vector<128x128xf32>
    %24 = arith.mulf %15, %23 : vector<128x128xf32>
    %25 = arith.addf %24, %17 : vector<128x128xf32>
    %cst_10 = arith.constant 0.000000e+00 : f32
    %26 = vector.broadcast %cst_10 : f32 to vector<128x128xf32>
    %27 = arith.maximumf %25, %26 : vector<128x128xf32>
    %28 = vector.extract_strided_slice %27 {offsets = [0, 0], sizes = [128, 8], strides = [1, 1]} : vector<128x128xf32> to vector<128x8xf32>
    %29 = vector.shape_cast %28 : vector<128x8xf32> to vector<1x16x8x8xf32>
    %c0_11 = arith.constant 0 : index
    %c0_12 = arith.constant 0 : index
    %c0_13 = arith.constant 0 : index
    %c0_14 = arith.constant 0 : index
    %30 = vector.load %arg5[%c0_11, %c0_12, %c0_13, %c0_14] : memref<1x16x8x8xf32, #tpu.memory_space<vmem>>, vector<1x16x8x8xf32>
    tpu.vector_store %arg5[%c0_11, %c0_12, %c0_13, %c0_14], %29 {strides = array<i32>} : memref<1x16x8x8xf32, #tpu.memory_space<vmem>>, vector<1x16x8x8xf32>,
    return
  }
  func.func @transform_0(%arg0: i32, %arg1: i32) -> (i32, i32, i32, i32) {
    %c0_i32 = arith.constant 0 : i32
    %c0_i32_0 = arith.constant 0 : i32
    %c0_i32_1 = arith.constant 0 : i32
    return %arg0, %c0_i32, %arg1, %c0_i32_0 : i32, i32, i32, i32
  }
  func.func @transform_1(%arg0: i32, %arg1: i32) -> (i32, i32) {
    %c0_i32 = arith.constant 0 : i32
    %c0_i32_0 = arith.constant 0 : i32
    %c0_i32_1 = arith.constant 0 : i32
    return %c0_i32, %c0_i32_0 : i32, i32
  }
  func.func @transform_2(%arg0: i32, %arg1: i32) -> (i32, i32) {
    %c0_i32 = arith.constant 0 : i32
    %c0_i32_0 = arith.constant 0 : i32
    %c0_i32_1 = arith.constant 0 : i32
    return %c0_i32, %c0_i32_0 : i32, i32
  }
  func.func @transform_3(%arg0: i32, %arg1: i32) -> (i32, i32, i32, i32) {
    %c0_i32 = arith.constant 0 : i32
    %c0_i32_0 = arith.constant 0 : i32
    %c0_i32_1 = arith.constant 0 : i32
    return %arg0, %c0_i32, %arg1, %c0_i32_0 : i32, i32, i32, i32
  }
}

</mosaic_0001>

<llo_original>
// kernel: temporal_conv_pallas.1
$region0: #{temporal_conv_pallas.1}
  #allocation0 [shape = 'u32[]', space=smem, size = 0x4, offset = 0x4, fixed_abs, tag = 'smem constant byte address 0x4 - core index']
  #allocation1 [shape = 'u32[72,128]{1,0:T(1,128)}', space=vmem, size = 0x9000, scoped, tag = 'internal scratch']
  %s0 = inlined_call_operand.vmem [shape: bf16[2,16,8,4], index: 0, kind: input, shape index: {}]
  %s1 = inlined_call_operand.vmem [shape: bf16[12,384], index: 1, kind: input, shape index: {}]
  %s2 = inlined_call_operand.vmem [shape: f32[1,384], index: 2, kind: input, shape index: {}]
  %s3 = inlined_call_operand.vmem [shape: f32[2,16,8,8], index: 3, kind: output, shape index: {}]
  %s4 = sld [smem:[#allocation0]]
  $region45: #{temporal_conv_pallas.1} parent=0
    _
  %s6 = ssub.s32 1, %s4
  %s7 = scalar_select 0, %s6, %s4
  loop: start=0, step=1, limit=4
  $region2: #{temporal_conv_pallas.1} parent=0 // loop_pre_header
    _
  $region3: #{temporal_conv_pallas.1} parent=0 // loop_header
    %s9 = sphi 0, %s13
    %p10 = scmp.ge.s32.totalorder %s9, 4
    %s16 = sphi 0, %s28
    %s17 = sphi 0, %s24
    %s18 = sphi 0, %s16
    %s19 = sphi 0, %s17
    %s20 = sphi 0, %s18
    %s21 = sphi 0, %s19
    %s33 = sphi 0, %s35
    %s36 = sphi 0, %s33
    %s37 = sphi 0, %s36
    %s53 = sphi 0, %s37
    %s57 = sphi 0, %s57
    %s59 = sphi 0, %s57
    %s60 = sphi 0, %s59
    %s74 = sphi 0, %s60
    %s78 = sphi 0, %s78
    %s80 = sphi 0, %s78
    %s81 = sphi 0, %s80
    %s95 = sphi 0, %s81
    %s103 = sphi 0, %s105
    %s106 = sphi 0, %s103
    %s107 = sphi 0, %s106
    %s123 = sphi 0, %s107
  $region4: #{temporal_conv_pallas.1} parent=0 // loop_header_branch
    %12 = sbr.rel (%p10) target = $region8
  $region5: #{temporal_conv_pallas.1} parent=0 // loop_body
    %s14 = ssub.s32 %s9, 1
    %s15 = ssub.s32 %s9, 2
    %s22 = sadd.s32 1, %s17
    %p23 = scmp.ge.s32.totalorder %s22, 1
    %s24 = scalar_select %p23, 0, %s22
    %s25 = sadd.s32 1, %s16
    %s26 = scalar_select %p23, %s25, %s16
    %p27 = scmp.ge.s32.totalorder %s26, 2
    %s28 = scalar_select %p27, 0, %s26
    %s29 = ssub.s32 %s16, %s28
    %s30 = ssub.s32 %s17, %s24
    %s31 = sor.u32 %s29, %s30
    %p32 = scmp.eq.s32.totalorder %s31, 0
    %s34 = sadd.s32 %s33, 1
    %s35 = scalar_select %p32, %s33, %s34
    %p38 = pneg %p32
    %p39 = scmp.eq.s32.totalorder %s9, 1
    %p40 = por %p38, %p39
    %p41 = scmp.ne.s32.totalorder %s33, %s36
    %p42 = scmp.eq.s32.totalorder %s9, 0
    %p43 = por %p41, %p42
    %p44 = scmp.ne.s32.totalorder %s33, %s36
    %p45 = scmp.eq.s32.totalorder %s14, 1
    %p46 = por %p44, %p45
    %p47 = scmp.ne.s32.totalorder %s36, %s37
    %p48 = scmp.eq.s32.totalorder %s14, 0
    %p49 = por %p47, %p48
    %p50 = scmp.ne.s32.totalorder %s36, %s37
    %p51 = scmp.eq.s32.totalorder %s15, 1
    %p52 = por %p50, %p51
    %p54 = scmp.ne.s32.totalorder %s37, %s53
    %p55 = scmp.eq.s32.totalorder %s15, 0
    %p56 = por %p54, %p55
    %s58 = sadd.s32 %s57, 1
    %p61 = scmp.eq.s32.totalorder %s9, 1
    %p62 = scmp.ne.s32.totalorder %s57, %s59
    %p63 = scmp.eq.s32.totalorder %s9, 0
    %p64 = por %p62, %p63
    %p65 = scmp.ne.s32.totalorder %s57, %s59
    %p66 = scmp.eq.s32.totalorder %s14, 1
    %p67 = por %p65, %p66
    %p68 = scmp.ne.s32.totalorder %s59, %s60
    %p69 = scmp.eq.s32.totalorder %s14, 0
    %p70 = por %p68, %p69
    %p71 = scmp.ne.s32.totalorder %s59, %s60
    %p72 = scmp.eq.s32.totalorder %s15, 1
    %p73 = por %p71, %p72
    %p75 = scmp.ne.s32.totalorder %s60, %s74
    %p76 = scmp.eq.s32.totalorder %s15, 0
    %p77 = por %p75, %p76
    %s79 = sadd.s32 %s78, 1
    %p82 = scmp.eq.s32.totalorder %s9, 1
    %p83 = scmp.ne.s32.totalorder %s78, %s80
    %p84 = scmp.eq.s32.totalorder %s9, 0
    %p85 = por %p83, %p84
    %p86 = scmp.ne.s32.totalorder %s78, %s80
    %p87 = scmp.eq.s32.totalorder %s14, 1
    %p88 = por %p86, %p87
    %p89 = scmp.ne.s32.totalorder %s80, %s81
    %p90 = scmp.eq.s32.totalorder %s14, 0
    %p91 = por %p89, %p90
    %p92 = scmp.ne.s32.totalorder %s80, %s81
    %p93 = scmp.eq.s32.totalorder %s15, 1
    %p94 = por %p92, %p93
    %p96 = scmp.ne.s32.totalorder %s81, %s95
    %p97 = scmp.eq.s32.totalorder %s15, 0
    %p98 = por %p96, %p97
    %s99 = ssub.s32 %s16, %s28
    %s100 = ssub.s32 %s17, %s24
    %s101 = sor.u32 %s99, %s100
    %p102 = scmp.eq.s32.totalorder %s101, 0
    %s104 = sadd.s32 %s103, 1
    %s105 = scalar_select %p102, %s103, %s104
    %p108 = pneg %p102
    %p109 = scmp.eq.s32.totalorder %s9, 1
    %p110 = por %p108, %p109
    %p111 = scmp.ne.s32.totalorder %s103, %s106
    %p112 = scmp.eq.s32.totalorder %s9, 0
    %p113 = por %p111, %p112
    %p114 = scmp.ne.s32.totalorder %s103, %s106
    %p115 = scmp.eq.s32.totalorder %s14, 1
    %p116 = por %p114, %p115
    %p117 = scmp.ne.s32.totalorder %s106, %s107
    %p118 = scmp.eq.s32.totalorder %s14, 0
    %p119 = por %p117, %p118
    %p120 = scmp.ne.s32.totalorder %s106, %s107
    %p121 = scmp.eq.s32.totalorder %s15, 1
    %p122 = por %p120, %p121
    %p124 = scmp.ne.s32.totalorder %s107, %s123
    %p125 = scmp.eq.s32.totalorder %s15, 0
    %p126 = por %p124, %p125
    %p127 = scmp.le.s32.totalorder 1, %s9
    %p128 = scmp.lt.s32.totalorder %s9, 3
    %p129 = pnand %p127, %p128
    %p130 = pneg %p129
    // Predicated region
    $region9: #{temporal_conv_pallas.1} parent=5 // pred_check
      _
    $region10: #{temporal_conv_pallas.1} parent=5 // pred_check_branch
      %132 = sbr.rel (%p129) target = $region12
    $region11: #{temporal_conv_pallas.1} parent=5 // pred_region
      %s133 = ssub.s32 %s9, 1
      // Predicated region
      $region13: #{temporal_conv_pallas.1} parent=11 // pred_check
        %p134 = pneg %p70
      $region14: #{temporal_conv_pallas.1} parent=11 // pred_check_branch
        %136 = sbr.rel (%p134) target = $region16
      $region15: #{temporal_conv_pallas.1} parent=11 // pred_region
        _
      $region16: #{temporal_conv_pallas.1} parent=11 // pred_fallthru
        _
      // Predicated region
      $region17: #{temporal_conv_pallas.1} parent=11 // pred_check
        %p137 = pneg %p91
      $region18: #{temporal_conv_pallas.1} parent=11 // pred_check_branch
        %139 = sbr.rel (%p137) target = $region20
      $region19: #{temporal_conv_pallas.1} parent=11 // pred_region
        _
      $region20: #{temporal_conv_pallas.1} parent=11 // pred_fallthru
        _
    $region12: #{temporal_conv_pallas.1} parent=5 // pred_fallthru
      _
    %p140 = scmp.lt.s32.totalorder %s9, 2
    // Predicated region
    $region21: #{temporal_conv_pallas.1} parent=5 // pred_check
      %p141 = pneg %p140
    $region22: #{temporal_conv_pallas.1} parent=5 // pred_check_branch
      %143 = sbr.rel (%p141) target = $region24
    $region23: #{temporal_conv_pallas.1} parent=5 // pred_region
      // Predicated region
      $region25: #{temporal_conv_pallas.1} parent=23 // pred_check
        %p144 = pneg %p43
      $region26: #{temporal_conv_pallas.1} parent=23 // pred_check_branch
        %146 = sbr.rel (%p144) target = $region28
      $region27: #{temporal_conv_pallas.1} parent=23 // pred_region
        %p147 = scmp.lt.s32.totalorder %s16, 1
        %s148 = scalar_select %p147, %s16, 1
        %p149 = scmp.lt.s32.totalorder %s17, 0
        %s150 = scalar_select %p149, %s17, 0
        %s151 = smul.addr %s148, 16
        %s152 = sadd.s32 %s150, %s151
        %s153 = smul.addr %s152, 4
        %s154 = scalar_lea.vmem %s0, %s153
      $region28: #{temporal_conv_pallas.1} parent=23 // pred_fallthru
        _
    $region24: #{temporal_conv_pallas.1} parent=5 // pred_fallthru
      _
    %p155 = scmp.le.s32.totalorder 1, %s9
    %p156 = scmp.lt.s32.totalorder %s9, 3
    %p157 = pnand %p155, %p156
    %p158 = pneg %p157
    // Predicated region
    $region29: #{temporal_conv_pallas.1} parent=5 // pred_check
      _
    $region30: #{temporal_conv_pallas.1} parent=5 // pred_check_branch
      %160 = sbr.rel (%p157) target = $region32
    $region31: #{temporal_conv_pallas.1} parent=5 // pred_region
      %s161 = ssub.s32 %s9, 1
      %p162 = scmp.lt.s32.totalorder %s18, 1
      %s163 = scalar_select %p162, %s18, 1
      %p164 = scmp.lt.s32.totalorder %s19, 0
      %s165 = scalar_select %p164, %s19, 0
      %s166 = smul.addr %s163, 16
      %s167 = sadd.s32 %s165, %s166
      %s168 = smul.addr %s167, 4
      %s169 = scalar_lea.vmem %s0, %s168
      %p170 = pneg %p49
      %p171 = pneg %p46
      %p172 = pneg %p70
      %p173 = pneg %p67
      %p174 = pneg %p91
      %p175 = pneg %p88
      %p176 = pneg %p119
      %p177 = pneg %p116
      %p178 = scmp.lt.s32.totalorder %s18, 1
      %s179 = scalar_select %p178, %s18, 1
      %p180 = scmp.lt.s32.totalorder %s19, 0
      %s181 = scalar_select %p180, %s19, 0
      %s182 = smul.addr %s179, 16
      %s183 = sadd.s32 %s181, %s182
      %s184 = smul.addr %s183, 8
      %s185 = scalar_lea.vmem %s3, %s184
      %p186 = scmp.lt.s32.totalorder %s18, 1
      %s187 = scalar_select %p186, %s18, 1
      %p188 = scmp.lt.s32.totalorder %s19, 0
      %s189 = scalar_select %p188, %s19, 0
      %s190 = smul.addr %s187, 16
      %s191 = sadd.s32 %s189, %s190
      %s192 = smul.addr %s191, 4
      %s193 = scalar_lea.vmem %s0, %s192
      %p194 = scmp.lt.s32.totalorder %s18, 1
      %s195 = scalar_select %p194, %s18, 1
      %p196 = scmp.lt.s32.totalorder %s19, 0
      %s197 = scalar_select %p196, %s19, 0
      %s198 = smul.addr %s195, 16
      %s199 = sadd.s32 %s197, %s198
      %s200 = smul.addr %s199, 8
      %s201 = scalar_lea.vmem %s3, %s200
      %v203 = vld [vmem:[%s193] sm:$0xf]
      %v204 = vld [vmem:[%s193 + $0x4] sm:$0xf]
      %v205 = vld [vmem:[%s193 + $0x8] sm:$0xf]
      %v206 = vld [vmem:[%s193 + $0xc] sm:$0xf]
      %v207 = vld [vmem:[%s193 + $0x10] sm:$0xf]
      %v208 = vld [vmem:[%s193 + $0x14] sm:$0xf]
      %v209 = vld [vmem:[%s193 + $0x18] sm:$0xf]
      %v210 = vld [vmem:[%s193 + $0x1c] sm:$0xf]
      %v211 = vld [vmem:[%s193 + $0x20] sm:$0xf]
      %v212 = vld [vmem:[%s193 + $0x24] sm:$0xf]
      %v213 = vld [vmem:[%s193 + $0x28] sm:$0xf]
      %v214 = vld [vmem:[%s193 + $0x2c] sm:$0xf]
      %v215 = vld [vmem:[%s193 + $0x30] sm:$0xf]
      %v216 = vld [vmem:[%s193 + $0x34] sm:$0xf]
      %v217 = vld [vmem:[%s193 + $0x38] sm:$0xf]
      %v218 = vld [vmem:[%s193 + $0x3c] sm:$0xf]
      %v235 = vunpack.c.l.b16 0
      %v236 = vunpack.c.l.b16 %v203
      %v237 = vunpack.c.l.b16 %v204
      %v238 = vunpack.c.l.b16 %v205
      %v239 = vunpack.c.l.b16 %v206
      %v240 = vunpack.c.l.b16 %v207
      %v241 = vunpack.c.l.b16 %v208
      %v242 = vunpack.c.l.b16 %v209
      %v243 = vunpack.c.l.b16 %v210
      %v244 = vunpack.c.l.b16 %v211
      %v245 = vunpack.c.l.b16 %v212
      %v246 = vunpack.c.l.b16 %v213
      %v247 = vunpack.c.l.b16 %v214
      %v248 = vunpack.c.l.b16 %v215
      %v249 = vunpack.c.l.b16 %v216
      %v250 = vunpack.c.l.b16 %v217
      %v251 = vpack.c.b16 %v236, %v235
      %v252 = vpack.c.b16 %v238, %v237
      %v253 = vpack.c.b16 %v240, %v239
      %v254 = vpack.c.b16 %v242, %v241
      %v255 = vpack.c.b16 %v244, %v243
      %v256 = vpack.c.b16 %v246, %v245
      %v257 = vpack.c.b16 %v248, %v247
      %v258 = vpack.c.b16 %v250, %v249
      %v260 = vunpack.c.l.b16 %v218
      %v261 = vpack.c.b16 %v237, %v236
      %v262 = vpack.c.b16 %v239, %v238
      %v263 = vpack.c.b16 %v241, %v240
      %v264 = vpack.c.b16 %v243, %v242
      %v265 = vpack.c.b16 %v245, %v244
      %v266 = vpack.c.b16 %v247, %v246
      %v267 = vpack.c.b16 %v249, %v248
      %v268 = vpack.c.b16 %v260, %v250
      %269 = vrot.lane.b32.xlu0 %v261, 4
      %v270 = vpop.permute.xlu0 %269
      %271 = vrot.lane.b32.xlu0 %v262, 4
      %v272 = vpop.permute.xlu0 %271
      %273 = vrot.lane.b32.xlu0 %v263, 4
      %v274 = vpop.permute.xlu0 %273
      %275 = vrot.lane.b32.xlu0 %v264, 4
      %v276 = vpop.permute.xlu0 %275
      %277 = vrot.lane.b32.xlu0 %v265, 4
      %v278 = vpop.permute.xlu0 %277
      %279 = vrot.lane.b32.xlu0 %v266, 4
      %v280 = vpop.permute.xlu0 %279
      %281 = vrot.lane.b32.xlu0 %v267, 4
      %v282 = vpop.permute.xlu0 %281
      %283 = vrot.lane.b32.xlu0 %v268, 4
      %v284 = vpop.permute.xlu0 %283
      %v285 = vpack.c.b16 %v235, %v260
      %286 = vrot.lane.b32.xlu0 %v252, 8
      %v287 = vpop.permute.xlu0 %286
      %288 = vrot.lane.b32.xlu0 %v253, 8
      %v289 = vpop.permute.xlu0 %288
      %290 = vrot.lane.b32.xlu0 %v254, 8
      %v291 = vpop.permute.xlu0 %290
      %292 = vrot.lane.b32.xlu0 %v255, 8
      %v293 = vpop.permute.xlu0 %292
      %294 = vrot.lane.b32.xlu0 %v256, 8
      %v295 = vpop.permute.xlu0 %294
      %296 = vrot.lane.b32.xlu0 %v257, 8
      %v297 = vpop.permute.xlu0 %296
      %298 = vrot.lane.b32.xlu0 %v258, 8
      %v299 = vpop.permute.xlu0 %298
      %300 = vrot.lane.b32.xlu0 %v285, 8
      %v301 = vpop.permute.xlu0 %300
      %vm302 = vcmask 31744
      %v305 = vsel %vm302, %v251, %v270
      %v308 = vsel %vm302, %v252, %v272
      %v311 = vsel %vm302, %v253, %v274
      %v314 = vsel %vm302, %v254, %v276
      %v317 = vsel %vm302, %v255, %v278
      %v320 = vsel %vm302, %v256, %v280
      %v323 = vsel %vm302, %v257, %v282
      %v326 = vsel %vm302, %v258, %v284
      %vm327 = vcmask 64512
      %v329 = vsel %vm327, %v305, %v287
      %v331 = vsel %vm327, %v308, %v289
      %v333 = vsel %vm327, %v311, %v291
      %v335 = vsel %vm327, %v314, %v293
      %v337 = vsel %vm327, %v317, %v295
      %v339 = vsel %vm327, %v320, %v297
      %v341 = vsel %vm327, %v323, %v299
      %v343 = vsel %vm327, %v326, %v301
      %v344 = vld [vmem:[%s1] sm:$0xff]
      %v345 = vld [vmem:[%s1 + $0x8] sm:$0xf]
      %v346 = vld [vmem:[%s1 + $0xc] sm:$0x33]
      %v347 = vld [vmem:[%s1 + $0x14] sm:$0x3]
      %v348 = vld [vmem:[%s2] sm:$0x7]
      %v350 = vperm.slane %v348, 0
      %v351 = vperm.slane %v348, 1
      %v352 = vperm.slane %v348, 2
      %v360 = vunpack.c.l.b16 %v344
      %v361 = vunpack.c.h.b16 %v344
      %v362 = vunpack.c.l.b16 %v345
      %v363 = vunpack.c.l.b16 %v346
      %v364 = vunpack.c.h.b16 %v346
      %v365 = vunpack.c.l.b16 %v347
      %v366 = vpack.c.b16 %v363, %v360
      %v367 = vpack.c.b16 %v364, %v361
      %v368 = vpack.c.b16 %v365, %v362
      %vm369 = vcmask 97280
      %v370 = vsel %vm369, %v329, 0
      %v372 = vsel %vm369, %v331, 0
      %v374 = vsel %vm369, %v333, 0
      %v376 = vsel %vm369, %v335, 0
      %v378 = vsel %vm369, %v337, 0
      %v380 = vsel %vm369, %v339, 0
      %v382 = vsel %vm369, %v341, 0
      %v384 = vsel %vm369, %v343, 0
      %vm386 = vcmask 1045504
      %v388 = vsel %vm386, %v366, 0
      %v391 = vsel %vm386, %v367, 0
      %v394 = vsel %vm386, %v368, 0
      %396 = vmatpush.bf16.msra.mxu0 0
      %397 = vmatpush.bf16.msra.mxu0 0
      %398 = vmatpush.bf16.msra.mxu0 0
      %399 = vmatpush.bf16.msra.mxu0 0
      %400 = vmatpush.bf16.msra.mxu0 0
      %401 = vmatpush.bf16.msra.mxu0 0
      %402 = vmatpush.bf16.msra.mxu0 0
      %403 = vmatpush.bf16.msra.mxu0 %v388
      %404 = vmatmul.bf16.gmra.mxu0 %v370
      %v405 = vpop.f32.mrf.mxu0
      %v406 = vadd.f32 %v350, %v405
      %v407 = vpop.f32.mrf.mxu0
      %v408 = vadd.f32 %v350, %v407
      %409 = vmatmul.bf16.gmra.mxu0 %v372
      %v410 = vpop.f32.mrf.mxu0
      %v411 = vadd.f32 %v350, %v410
      %v412 = vpop.f32.mrf.mxu0
      %v413 = vadd.f32 %v350, %v412
      %414 = vmatmul.bf16.gmra.mxu0 %v374
      %v415 = vpop.f32.mrf.mxu0
      %v416 = vadd.f32 %v350, %v415
      %v417 = vpop.f32.mrf.mxu0
      %v418 = vadd.f32 %v350, %v417
      %419 = vmatmul.bf16.gmra.mxu0 %v376
      %v420 = vpop.f32.mrf.mxu0
      %v421 = vadd.f32 %v350, %v420
      %v422 = vpop.f32.mrf.mxu0
      %v423 = vadd.f32 %v350, %v422
      %424 = vmatmul.bf16.gmra.mxu0 %v378
      %v425 = vpop.f32.mrf.mxu0
      %v426 = vadd.f32 %v350, %v425
      %v427 = vpop.f32.mrf.mxu0
      %v428 = vadd.f32 %v350, %v427
      %429 = vmatmul.bf16.gmra.mxu0 %v380
      %v430 = vpop.f32.mrf.mxu0
      %v431 = vadd.f32 %v350, %v430
      %v432 = vpop.f32.mrf.mxu0
      %v433 = vadd.f32 %v350, %v432
      %434 = vmatmul.bf16.gmra.mxu0 %v382
      %v435 = vpop.f32.mrf.mxu0
      %v436 = vadd.f32 %v350, %v435
      %v437 = vpop.f32.mrf.mxu0
      %v438 = vadd.f32 %v350, %v437
      %439 = vmatmul.bf16.gmra.mxu0 %v384
      %v440 = vpop.f32.mrf.mxu0
      %v441 = vadd.f32 %v350, %v440
      %v442 = vpop.f32.mrf.mxu0
      %v443 = vadd.f32 %v350, %v442
      %444 = vdwg.mxu0
      %445 = vmatpush.bf16.msra.mxu0 0
      %446 = vmatpush.bf16.msra.mxu0 0
      %447 = vmatpush.bf16.msra.mxu0 0
      %448 = vmatpush.bf16.msra.mxu0 0
      %449 = vmatpush.bf16.msra.mxu0 0
      %450 = vmatpush.bf16.msra.mxu0 0
      %451 = vmatpush.bf16.msra.mxu0 0
      %452 = vmatpush.bf16.msra.mxu0 %v391
      %453 = vmatmul.bf16.gmra.mxu0 %v370
      %v454 = vpop.f32.mrf.mxu0
      %v455 = vadd.f32 %v351, %v454
      %v456 = vpop.f32.mrf.mxu0
      %v457 = vadd.f32 %v351, %v456
      %458 = vmatmul.bf16.gmra.mxu0 %v372
      %v459 = vpop.f32.mrf.mxu0
      %v460 = vadd.f32 %v351, %v459
      %v461 = vpop.f32.mrf.mxu0
      %v462 = vadd.f32 %v351, %v461
      %463 = vmatmul.bf16.gmra.mxu0 %v374
      %v464 = vpop.f32.mrf.mxu0
      %v465 = vadd.f32 %v351, %v464
      %v466 = vpop.f32.mrf.mxu0
      %v467 = vadd.f32 %v351, %v466
      %468 = vmatmul.bf16.gmra.mxu0 %v376
      %v469 = vpop.f32.mrf.mxu0
      %v470 = vadd.f32 %v351, %v469
      %v471 = vpop.f32.mrf.mxu0
      %v472 = vadd.f32 %v351, %v471
      %473 = vmatmul.bf16.gmra.mxu0 %v378
      %v474 = vpop.f32.mrf.mxu0
      %v475 = vadd.f32 %v351, %v474
      %v476 = vpop.f32.mrf.mxu0
      %v477 = vadd.f32 %v351, %v476
      %478 = vmatmul.bf16.gmra.mxu0 %v380
      %v479 = vpop.f32.mrf.mxu0
      %v480 = vadd.f32 %v351, %v479
      %v481 = vpop.f32.mrf.mxu0
      %v482 = vadd.f32 %v351, %v481
      %483 = vmatmul.bf16.gmra.mxu0 %v382
      %v484 = vpop.f32.mrf.mxu0
      %v485 = vadd.f32 %v351, %v484
      %v486 = vpop.f32.mrf.mxu0
      %v487 = vadd.f32 %v351, %v486
      %488 = vmatmul.bf16.gmra.mxu0 %v384
      %v489 = vpop.f32.mrf.mxu0
      %v490 = vadd.f32 %v351, %v489
      %v491 = vpop.f32.mrf.mxu0
      %v492 = vadd.f32 %v351, %v491
      %493 = vdwg.mxu0
      %494 = vmatpush.bf16.msra.mxu0 0
      %495 = vmatpush.bf16.msra.mxu0 0
      %496 = vmatpush.bf16.msra.mxu0 0
      %497 = vmatpush.bf16.msra.mxu0 0
      %498 = vmatpush.bf16.msra.mxu0 0
      %499 = vmatpush.bf16.msra.mxu0 0
      %500 = vmatpush.bf16.msra.mxu0 0
      %501 = vmatpush.bf16.msra.mxu0 %v394
      %502 = vmatmul.bf16.gmra.mxu0 %v370
      %v503 = vpop.f32.mrf.mxu0
      %v504 = vadd.f32 %v352, %v503
      %v505 = vpop.f32.mrf.mxu0
      %v506 = vadd.f32 %v352, %v505
      %507 = vmatmul.bf16.gmra.mxu0 %v372
      %v508 = vpop.f32.mrf.mxu0
      %v509 = vadd.f32 %v352, %v508
      %v510 = vpop.f32.mrf.mxu0
      %v511 = vadd.f32 %v352, %v510
      %512 = vmatmul.bf16.gmra.mxu0 %v374
      %v513 = vpop.f32.mrf.mxu0
      %v514 = vadd.f32 %v352, %v513
      %v515 = vpop.f32.mrf.mxu0
      %v516 = vadd.f32 %v352, %v515
      %517 = vmatmul.bf16.gmra.mxu0 %v376
      %v518 = vpop.f32.mrf.mxu0
      %v519 = vadd.f32 %v352, %v518
      %v520 = vpop.f32.mrf.mxu0
      %v521 = vadd.f32 %v352, %v520
      %522 = vmatmul.bf16.gmra.mxu0 %v378
      %v523 = vpop.f32.mrf.mxu0
      %v524 = vadd.f32 %v352, %v523
      %v525 = vpop.f32.mrf.mxu0
      %v526 = vadd.f32 %v352, %v525
      %527 = vmatmul.bf16.gmra.mxu0 %v380
      %v528 = vpop.f32.mrf.mxu0
      %v529 = vadd.f32 %v352, %v528
      %v530 = vpop.f32.mrf.mxu0
      %v531 = vadd.f32 %v352, %v530
      %532 = vmatmul.bf16.gmra.mxu0 %v382
      %v533 = vpop.f32.mrf.mxu0
      %v534 = vadd.f32 %v352, %v533
      %v535 = vpop.f32.mrf.mxu0
      %v536 = vadd.f32 %v352, %v535
      %537 = vmatmul.bf16.gmra.mxu0 %v384
      %v538 = vpop.f32.mrf.mxu0
      %v539 = vadd.f32 %v352, %v538
      %v540 = vpop.f32.mrf.mxu0
      %v541 = vadd.f32 %v352, %v540
      %542 = vdwg.mxu0
      %v543 = vsub.f32 0.0, %v455
      %v544 = vsub.f32 0.0, %v457
      %v545 = vsub.f32 0.0, %v460
      %v546 = vsub.f32 0.0, %v462
      %v547 = vsub.f32 0.0, %v465
      %v548 = vsub.f32 0.0, %v467
      %v549 = vsub.f32 0.0, %v470
      %v550 = vsub.f32 0.0, %v472
      %v551 = vsub.f32 0.0, %v475
      %v552 = vsub.f32 0.0, %v477
      %v553 = vsub.f32 0.0, %v480
      %v554 = vsub.f32 0.0, %v482
      %v555 = vsub.f32 0.0, %v485
      %v556 = vsub.f32 0.0, %v487
      %v557 = vsub.f32 0.0, %v490
      %v558 = vsub.f32 0.0, %v492
      %v559 = vmul.f32 %v543, 1.442695
      %v560 = vpow.pop %v559
      %v561 = vmul.f32 %v544, 1.442695
      %v562 = vpow.pop %v561
      %v563 = vmul.f32 %v545, 1.442695
      %v564 = vpow.pop %v563
      %v565 = vmul.f32 %v546, 1.442695
      %v566 = vpow.pop %v565
      %v567 = vmul.f32 %v547, 1.442695
      %v568 = vpow.pop %v567
      %v569 = vmul.f32 %v548, 1.442695
      %v570 = vpow.pop %v569
      %v571 = vmul.f32 %v549, 1.442695
      %v572 = vpow.pop %v571
      %v573 = vmul.f32 %v550, 1.442695
      %v574 = vpow.pop %v573
      %v575 = vmul.f32 %v551, 1.442695
      %v576 = vpow.pop %v575
      %v577 = vmul.f32 %v552, 1.442695
      %v578 = vpow.pop %v577
      %v579 = vmul.f32 %v553, 1.442695
      %v580 = vpow.pop %v579
      %v581 = vmul.f32 %v554, 1.442695
      %v582 = vpow.pop %v581
      %v583 = vmul.f32 %v555, 1.442695
      %v584 = vpow.pop %v583
      %v585 = vmul.f32 %v556, 1.442695
      %v586 = vpow.pop %v585
      %v587 = vmul.f32 %v557, 1.442695
      %v588 = vpow.pop %v587
      %v589 = vmul.f32 %v558, 1.442695
      %v590 = vpow.pop %v589
      %v591 = vadd.f32 %v560, 1.0
      %v592 = vadd.f32 %v562, 1.0
      %v593 = vadd.f32 %v564, 1.0
      %v594 = vadd.f32 %v566, 1.0
      %v595 = vadd.f32 %v568, 1.0
      %v596 = vadd.f32 %v570, 1.0
      %v597 = vadd.f32 %v572, 1.0
      %v598 = vadd.f32 %v574, 1.0
      %v599 = vadd.f32 %v576, 1.0
      %v600 = vadd.f32 %v578, 1.0
      %v601 = vadd.f32 %v580, 1.0
      %v602 = vadd.f32 %v582, 1.0
      %v603 = vadd.f32 %v584, 1.0
      %v604 = vadd.f32 %v586, 1.0
      %v605 = vadd.f32 %v588, 1.0
      %v606 = vadd.f32 %v590, 1.0
      %v607 = vrcp.pop %v591
      %v608 = vrcp.pop %v592
      %v609 = vrcp.pop %v593
      %v610 = vrcp.pop %v594
      %v611 = vrcp.pop %v595
      %v612 = vrcp.pop %v596
      %v613 = vrcp.pop %v597
      %v614 = vrcp.pop %v598
      %v615 = vrcp.pop %v599
      %v616 = vrcp.pop %v600
      %v617 = vrcp.pop %v601
      %v618 = vrcp.pop %v602
      %v619 = vrcp.pop %v603
      %v620 = vrcp.pop %v604
      %v621 = vrcp.pop %v605
      %v622 = vrcp.pop %v606
      %v623 = vmul.f32 %v406, %v607
      %v624 = vmul.f32 %v408, %v608
      %v625 = vmul.f32 %v411, %v609
      %v626 = vmul.f32 %v413, %v610
      %v627 = vmul.f32 %v416, %v611
      %v628 = vmul.f32 %v418, %v612
      %v629 = vmul.f32 %v421, %v613
      %v630 = vmul.f32 %v423, %v614
      %v631 = vmul.f32 %v426, %v615
      %v632 = vmul.f32 %v428, %v616
      %v633 = vmul.f32 %v431, %v617
      %v634 = vmul.f32 %v433, %v618
      %v635 = vmul.f32 %v436, %v619
      %v636 = vmul.f32 %v438, %v620
      %v637 = vmul.f32 %v441, %v621
      %v638 = vmul.f32 %v443, %v622
      %v639 = vadd.f32 %v623, %v504
      %v640 = vadd.f32 %v624, %v506
      %v641 = vadd.f32 %v625, %v509
      %v642 = vadd.f32 %v626, %v511
      %v643 = vadd.f32 %v627, %v514
      %v644 = vadd.f32 %v628, %v516
      %v645 = vadd.f32 %v629, %v519
      %v646 = vadd.f32 %v630, %v521
      %v647 = vadd.f32 %v631, %v524
      %v648 = vadd.f32 %v632, %v526
      %v649 = vadd.f32 %v633, %v529
      %v650 = vadd.f32 %v634, %v531
      %v651 = vadd.f32 %v635, %v534
      %v652 = vadd.f32 %v636, %v536
      %v653 = vadd.f32 %v637, %v539
      %v654 = vadd.f32 %v638, %v541
      %v655 = vmax.f32 %v639, 0.0
      %v656 = vmax.f32 %v640, 0.0
      %v657 = vmax.f32 %v641, 0.0
      %v658 = vmax.f32 %v642, 0.0
      %v659 = vmax.f32 %v643, 0.0
      %v660 = vmax.f32 %v644, 0.0
      %v661 = vmax.f32 %v645, 0.0
      %v662 = vmax.f32 %v646, 0.0
      %v663 = vmax.f32 %v647, 0.0
      %v664 = vmax.f32 %v648, 0.0
      %v665 = vmax.f32 %v649, 0.0
      %v666 = vmax.f32 %v650, 0.0
      %v667 = vmax.f32 %v651, 0.0
      %v668 = vmax.f32 %v652, 0.0
      %v669 = vmax.f32 %v653, 0.0
      %v670 = vmax.f32 %v654, 0.0
      %671 = vst.msk [vmem:[%s201] sm:$0xff] %vm327, %v655
      %672 = vst.msk [vmem:[%s201 + $0x8] sm:$0xff] %vm327, %v656
      %673 = vst.msk [vmem:[%s201 + $0x10] sm:$0xff] %vm327, %v657
      %674 = vst.msk [vmem:[%s201 + $0x18] sm:$0xff] %vm327, %v658
      %675 = vst.msk [vmem:[%s201 + $0x20] sm:$0xff] %vm327, %v659
      %676 = vst.msk [vmem:[%s201 + $0x28] sm:$0xff] %vm327, %v660
      %677 = vst.msk [vmem:[%s201 + $0x30] sm:$0xff] %vm327, %v661
      %678 = vst.msk [vmem:[%s201 + $0x38] sm:$0xff] %vm327, %v662
      %679 = vst.msk [vmem:[%s201 + $0x40] sm:$0xff] %vm327, %v663
      %680 = vst.msk [vmem:[%s201 + $0x48] sm:$0xff] %vm327, %v664
      %681 = vst.msk [vmem:[%s201 + $0x50] sm:$0xff] %vm327, %v665
      %682 = vst.msk [vmem:[%s201 + $0x58] sm:$0xff] %vm327, %v666
      %683 = vst.msk [vmem:[%s201 + $0x60] sm:$0xff] %vm327, %v667
      %684 = vst.msk [vmem:[%s201 + $0x68] sm:$0xff] %vm327, %v668
      %685 = vst.msk [vmem:[%s201 + $0x70] sm:$0xff] %vm327, %v669
      %686 = vst.msk [vmem:[%s201 + $0x78] sm:$0xff] %vm327, %v670
      %p687 = scmp.lt.s32.totalorder %s18, 1
      %s688 = scalar_select %p687, %s18, 1
      %p689 = scmp.lt.s32.totalorder %s19, 0
      %s690 = scalar_select %p689, %s19, 0
      %s691 = smul.addr %s688, 16
      %s692 = sadd.s32 %s690, %s691
      %s693 = smul.addr %s692, 8
      %s694 = scalar_lea.vmem %s3, %s693
      // Predicated region
      $region33: #{temporal_conv_pallas.1} parent=31 // pred_check
        %p695 = pneg %p116
      $region34: #{temporal_conv_pallas.1} parent=31 // pred_check_branch
        %697 = sbr.rel (%p695) target = $region36
      $region35: #{temporal_conv_pallas.1} parent=31 // pred_region
        _
      $region36: #{temporal_conv_pallas.1} parent=31 // pred_fallthru
        _
    $region32: #{temporal_conv_pallas.1} parent=5 // pred_fallthru
      _
    %p698 = scmp.le.s32.totalorder 2, %s9
    // Predicated region
    $region37: #{temporal_conv_pallas.1} parent=5 // pred_check
      %p699 = pneg %p698
    $region38: #{temporal_conv_pallas.1} parent=5 // pred_check_branch
      %701 = sbr.rel (%p699) target = $region40
    $region39: #{temporal_conv_pallas.1} parent=5 // pred_region
      %s702 = ssub.s32 %s9, 2
      // Predicated region
      $region41: #{temporal_conv_pallas.1} parent=39 // pred_check
        %p703 = pneg %p122
      $region42: #{temporal_conv_pallas.1} parent=39 // pred_check_branch
        %705 = sbr.rel (%p703) target = $region44
      $region43: #{temporal_conv_pallas.1} parent=39 // pred_region
        %p706 = scmp.lt.s32.totalorder %s20, 1
        %s707 = scalar_select %p706, %s20, 1
        %p708 = scmp.lt.s32.totalorder %s21, 0
        %s709 = scalar_select %p708, %s21, 0
        %s710 = smul.addr %s707, 16
        %s711 = sadd.s32 %s709, %s710
        %s712 = smul.addr %s711, 8
        %s713 = scalar_lea.vmem %s3, %s712
      $region44: #{temporal_conv_pallas.1} parent=39 // pred_fallthru
        _
    $region40: #{temporal_conv_pallas.1} parent=5 // pred_fallthru
      _
  $region6: #{temporal_conv_pallas.1} parent=0 // loop_footer
    %s13 = sadd.s32 1, %s9
  $region7: #{temporal_conv_pallas.1} parent=0 // loop_footer_branch
    %8 = sbr.rel target = $region3
  $region8: #{temporal_conv_pallas.1} parent=0 // loop_exit
    _

</llo_original>
